<compile_context>
chip_gen: v7x
topology: tpu7x:2x2x1
jax: 0.10.0
libtpu: 0.0.40
codegen_flags: <defaults>
</compile_context>

<pallas_src>
import jax
import jax.numpy as jnp
from jax.experimental import pallas as pl
from jax.experimental.pallas import tpu as pltpu


def vector_att_kernel(x_ref, w_ref, o_ref):
    # x_ref: (1, T, D, TILE_HW) block;  w_ref: (D, 1);  o_ref: (1, T, D, TILE_HW)
    x = x_ref[0]                                    # native dtype, no f32 block copy
    w = w_ref[...].astype(jnp.float32)              # (D, 1): D on sublanes, matches x

    # Linear(D, 1, bias=False): f32 upcast fused into the sublane reduction
    # over D (VPU mul + XLU reduce).
    scores = jnp.sum(x.astype(jnp.float32) * w[None, :, :], axis=1)      # (T, HWt)

    # softmax over the time axis T; exact divide (kernel is HBM-bound, the
    # exact reciprocal is free and keeps attention rows summing to 1).
    m = jnp.max(scores, axis=0, keepdims=True)                           # (1, HWt)
    e = jnp.exp(scores - m)                                              # (T, HWt)
    attn = e / jnp.sum(e, axis=0, keepdims=True)                         # (T, HWt)

    # Reweight in the input's native dtype (bf16 VALU on v6e/v7x; f32 on v5e).
    o_ref[0] = x * attn[:, None, :].astype(x.dtype)


def _round_up(x, m):
    return (x + m - 1) // m * m


def _vmem_capacity_bytes():
    try:
        return int(pltpu.get_tpu_info().vmem_capacity_bytes)
    except Exception:
        return 64 << 20          # conservative fallback: v7x has 64 MiB per TensorCore


def _per_step_vmem_bytes(T, D, tile, itemsize):
    # BlockSpec double-buffers both the input and the output block, plus the
    # kernel's f32 temporaries (scores/exp/attn and an upper bound on the
    # fusion intermediates of the D reduction).
    io = 2 * (T * D * tile * itemsize) * 2           # 2 bufs x (in block + out block)
    temps = T * D * tile * 4 + 4 * T * tile * 4      # f32 intermediates (upper bound)
    return io + temps


def _choose_tile_hw(HW, T, D, B, itemsize, budget_bytes):
    """Largest lane-aligned (multiple-of-128) HW tile whose per-step VMEM cost
    fits the budget; prefers a single full-HW contiguous block when possible."""
    hw128 = _round_up(HW, 128)
    tile = 128                           # minimum lane-dense tile (fallback)
    t = 256
    while t <= hw128:
        if _per_step_vmem_bytes(T, D, t, itemsize) > budget_bytes:
            break                        # per-step cost is monotone in t
        tile = t
        t += 128
    tile = min(tile, hw128)
    # v7x has 2 TensorCores sharing the "parallel" grid axes: make sure there
    # are at least 2 grid steps when batch alone cannot provide them.
    if B == 1 and tile >= hw128 and hw128 >= 256:
        tile = _round_up(hw128 // 2, 128)
    return tile


def vector_att(hidden_states, weight, lengths=None):
    """hidden_states: (B, T, D, H, W); weight: (1, D) = nn.Linear(D, 1).weight."""
    # NOTE: the PyTorch `lengths` branch slices `weights[i, t:]` with t == T,
    # which is an empty slice -> a no-op for any `lengths`, so it is ignored.
    # TODO(synk): add a masked softmax over T if true per-sample masking is ever needed.
    del lengths

    B, T, D, H, W = hidden_states.shape
    HW = H * W
    in_dt = hidden_states.dtype
    itemsize = jnp.dtype(in_dt).itemsize

    # Free reshape (merges contiguous trailing dims) -- no HBM transpose.
    x = hidden_states.reshape(B, T, D, HW)
    # Weight with D on the sublane axis so the in-kernel broadcast is layout-free.
    w_col = weight.reshape(D, 1)

    cap = _vmem_capacity_bytes()
    budget = min(cap // 2, 64 << 20)      # generation-aware: ~32 MiB/step on v7x, 64 MiB v5e/v6e
    tile = _choose_tile_hw(HW, T, D, B, itemsize, budget)

    # Pad HW up to a multiple of the tile: keeps (8,128) divisibility and
    # lane-dense (unmasked) stores; padded lanes are zero and sliced off below.
    HW_pad = _round_up(HW, tile)
    if HW_pad != HW:
        x = jnp.pad(x, ((0, 0), (0, 0), (0, 0), (0, HW_pad - HW)))
    n_hw = HW_pad // tile

    step_bytes = _per_step_vmem_bytes(T, D, tile, itemsize)
    vmem_limit = int(min(max(step_bytes * 5 // 4 + (1 << 20), 32 << 20),
                         cap * 9 // 10))

    cost = pl.CostEstimate(
        flops=3 * B * T * D * HW_pad,              # score mul+add and reweight mul
        transcendentals=B * T * HW_pad,            # exp
        bytes_accessed=2 * B * T * D * HW_pad * itemsize,
    )

    out = pl.pallas_call(
        vector_att_kernel,
        out_shape=jax.ShapeDtypeStruct((B, T, D, HW_pad), in_dt),
        grid=(B, n_hw),
        in_specs=[
            pl.BlockSpec((1, T, D, tile), lambda b, s: (b, 0, 0, s)),
            pl.BlockSpec((D, 1), lambda b, s: (0, 0)),
        ],
        out_specs=pl.BlockSpec((1, T, D, tile), lambda b, s: (b, 0, 0, s)),
        compiler_params=pltpu.CompilerParams(
            dimension_semantics=("parallel", "parallel"),
            vmem_limit_bytes=vmem_limit,
        ),
        cost_estimate=cost,
    )(x, w_col)

    if HW_pad != HW:
        out = out[..., :HW]
    return out.reshape(B, T, D, H, W)   # free reshape back to native layout


def vector_att_ref(hidden_states, weight):
    """Pure-JAX reference mirroring the PyTorch forward exactly."""
    w = weight.reshape(1, 1, -1, 1, 1).astype(jnp.float32)
    hs32 = hidden_states.astype(jnp.float32)
    scores = jnp.sum(hs32 * w, axis=2, keepdims=True)       # (B, T, 1, H, W)
    attn = jax.nn.softmax(scores, axis=1)                   # softmax over T
    return (attn * hs32).astype(hidden_states.dtype)        # (B, T, D, H, W)


if __name__ == "__main__":
    B, T, D, H, W = 2, 8, 32, 16, 16

    key = jax.random.PRNGKey(0)
    hidden_states = jax.random.normal(key, (B, T, D, H, W), dtype=jnp.float32)

    # nn.Linear(hidden_dim_size, 1, bias=False) with nn.init.constant_(weight, 1)
    weight = jnp.ones((1, D), dtype=jnp.float32)

    out = jax.block_until_ready(vector_att(hidden_states, weight))
    ref = vector_att_ref(hidden_states, weight)

    assert out.shape == (B, T, D, H, W)
    assert jnp.allclose(out, ref, atol=1e-4, rtol=1e-4), "mismatch vs reference"

    print("KERNEL_OK")
</pallas_src>

<mosaic_0001>
module attributes {stable_mosaic.version = 11 : i64} {
  func.func @vector_att_kernel(%arg0: i32, %arg1: i32, %arg2: memref<1x8x32x256xf32, #tpu.memory_space<vmem>>, %arg3: memref<32x1xf32, #tpu.memory_space<vmem>>, %arg4: memref<1x8x32x256xf32, #tpu.memory_space<vmem>>) attributes {dimension_semantics = [#tpu.dimension_semantics<parallel>, #tpu.dimension_semantics<parallel>], iteration_bounds = array<i64: 2, 1>, scalar_prefetch = 0 : i64, scratch_operands = 0 : i64, tpu.core_type = #tpu.core_type<tc>, window_params = [{transform_indices = @transform_0, window_bounds = array<i64: 1, 8, 32, 256>}, {pipeline_mode = #tpu.pipeline_mode<synchronous>, transform_indices = @transform_1, window_bounds = array<i64: 32, 1>}, {transform_indices = @transform_2, window_bounds = array<i64: 1, 8, 32, 256>}]} {
    %c0 = arith.constant 0 : index
    %c0_0 = arith.constant 0 : index
    %c0_1 = arith.constant 0 : index
    %c0_2 = arith.constant 0 : index
    %0 = vector.load %arg2[%c0, %c0_0, %c0_1, %c0_2] : memref<1x8x32x256xf32, #tpu.memory_space<vmem>>, vector<1x8x32x256xf32>
    %1 = vector.shape_cast %0 : vector<1x8x32x256xf32> to vector<8x32x256xf32>
    %c0_3 = arith.constant 0 : index
    %c0_4 = arith.constant 0 : index
    %2 = vector.load %arg3[%c0_3, %c0_4] : memref<32x1xf32, #tpu.memory_space<vmem>>, vector<32x1xf32>
    %3 = vector.shape_cast %2 : vector<32x1xf32> to vector<1x32x1xf32>
    %4 = vector.broadcast %3 : vector<1x32x1xf32> to vector<8x32x256xf32>
    %5 = arith.mulf %1, %4 : vector<8x32x256xf32>
    %cst = arith.constant dense<0.000000e+00> : vector<8x256xf32>
    %6 = vector.multi_reduction <add>, %5, %cst [1] : vector<8x32x256xf32> to vector<8x256xf32>
    %cst_5 = arith.constant dense<0xFF800000> : vector<256xf32>
    %7 = vector.multi_reduction <maximumf>, %6, %cst_5 [0] : vector<8x256xf32> to vector<256xf32>
    %8 = vector.shape_cast %7 : vector<256xf32> to vector<1x256xf32>
    %9 = vector.broadcast %8 : vector<1x256xf32> to vector<8x256xf32>
    %10 = arith.subf %6, %9 : vector<8x256xf32>
    %11 = math.exp %10 : vector<8x256xf32>
    %cst_6 = arith.constant dense<0.000000e+00> : vector<256xf32>
    %12 = vector.multi_reduction <add>, %11, %cst_6 [0] : vector<8x256xf32> to vector<256xf32>
    %13 = vector.shape_cast %12 : vector<256xf32> to vector<1x256xf32>
    %14 = vector.broadcast %13 : vector<1x256xf32> to vector<8x256xf32>
    %15 = arith.divf %11, %14 : vector<8x256xf32>
    %16 = vector.shape_cast %15 : vector<8x256xf32> to vector<8x1x256xf32>
    %17 = vector.broadcast %16 : vector<8x1x256xf32> to vector<8x32x256xf32>
    %18 = arith.mulf %1, %17 : vector<8x32x256xf32>
    %c0_7 = arith.constant 0 : index
    %c0_8 = arith.constant 0 : index
    %c0_9 = arith.constant 0 : index
    %c0_10 = arith.constant 0 : index
    %19 = vector.load %arg4[%c0_7, %c0_8, %c0_9, %c0_10] : memref<1x8x32x256xf32, #tpu.memory_space<vmem>>, vector<1x8x32x256xf32>
    %20 = vector.shape_cast %19 : vector<1x8x32x256xf32> to vector<8x32x256xf32>
    %21 = vector.shape_cast %18 : vector<8x32x256xf32> to vector<1x8x32x256xf32>
    tpu.vector_store %arg4[%c0_7, %c0_8, %c0_9, %c0_10], %21 {strides = array<i32>} : memref<1x8x32x256xf32, #tpu.memory_space<vmem>>, vector<1x8x32x256xf32>,
    return
  }
  func.func @transform_0(%arg0: i32, %arg1: i32) -> (i32, i32, i32, i32) {
    %c0_i32 = arith.constant 0 : i32
    %c0_i32_0 = arith.constant 0 : i32
    %c0_i32_1 = arith.constant 0 : i32
    return %arg0, %c0_i32, %c0_i32_0, %arg1 : i32, i32, i32, i32
  }
  func.func @transform_1(%arg0: i32, %arg1: i32) -> (i32, i32) {
    %c0_i32 = arith.constant 0 : i32
    %c0_i32_0 = arith.constant 0 : i32
    %c0_i32_1 = arith.constant 0 : i32
    return %c0_i32, %c0_i32_0 : i32, i32
  }
  func.func @transform_2(%arg0: i32, %arg1: i32) -> (i32, i32, i32, i32) {
    %c0_i32 = arith.constant 0 : i32
    %c0_i32_0 = arith.constant 0 : i32
    %c0_i32_1 = arith.constant 0 : i32
    return %arg0, %c0_i32, %c0_i32_0, %arg1 : i32, i32, i32, i32
  }
}

</mosaic_0001>

<llo_original>
// kernel: tpu_custom_call.1
$region0: #{tpu_custom_call.1}
  #allocation0 [shape = 'u32[]', space=smem, size = 0x4, offset = 0x4, fixed_abs, tag = 'smem constant byte address 0x4 - core index']
  #allocation1 [shape = 'u32[144,128]{1,0:T(1,128)}', space=vmem, size = 0x12000, scoped, tag = 'internal scratch']
  %s0 = inlined_call_operand.hbm [shape: f32[2,8,32,256], index: 0, kind: input, shape index: {}]
  %s1 = inlined_call_operand.vmem [shape: f32[32,1], index: 1, kind: input, shape index: {}]
  %s2 = inlined_call_operand.hbm [shape: f32[2,8,32,256], index: 2, kind: output, shape index: {}]
  %s3 = sld [smem:[#allocation0]]
  $region45: #{tpu_custom_call.1} parent=0
    _
  %s5 = ssub.s32 1, %s3
  %s6 = scalar_select 0, %s5, %s3
  $region1: #{tpu_custom_call.1} parent=0
    #allocation2 [shape = 'u8[524288]{0}', space=vmem, size = 0x80000, scoped, tag = 'input window, operand 0']
    #allocation3 [shape = 's32[2]{0}', space=sflag, size = 0x8, scoped, tag = 'scoped memory for tpu_custom_call.1']
    #allocation4 [shape = 's32[2]{0}', space=sflag, size = 0x8, scoped, tag = 'scoped memory for tpu_custom_call.1']
    #allocation5 [shape = 'u8[524288]{0}', space=vmem, size = 0x80000, scoped, tag = 'output window, operand 0']
    %7 = vsyncpa [#allocation3], 0
    %s8 = scalar_lea.sflag [#allocation3], 1
    %9 = vsyncpa %s8, 0
    %10 = vsyncpa [#allocation4], 0
    %s11 = scalar_lea.sflag [#allocation4], 1
    %12 = vsyncpa %s11, 0
    loop: start=0, step=1, limit=4
    $region2: #{tpu_custom_call.1} parent=1 // loop_pre_header
      _
    $region3: #{tpu_custom_call.1} parent=1 // loop_header
      %s14 = sphi 0, %s18
      %p15 = scmp.ge.s32.totalorder %s14, 4
      %s21 = sphi 0, %s33
      %s22 = sphi 0, %s29
      %s23 = sphi 0, %s21
      %s24 = sphi 0, %s22
      %s25 = sphi 0, %s23
      %s26 = sphi 0, %s24
      %s38 = sphi 0, %s40
      %s41 = sphi 0, %s38
      %s42 = sphi 0, %s41
      %s58 = sphi 0, %s42
      %s62 = sphi 0, %s62
      %s64 = sphi 0, %s62
      %s65 = sphi 0, %s64
      %s79 = sphi 0, %s65
      %s87 = sphi 0, %s89
      %s90 = sphi 0, %s87
      %s91 = sphi 0, %s90
      %s107 = sphi 0, %s91
    $region4: #{tpu_custom_call.1} parent=1 // loop_header_branch
      %17 = sbr.rel (%p15) target = $region8
    $region5: #{tpu_custom_call.1} parent=1 // loop_body
      %s19 = ssub.s32 %s14, 1
      %s20 = ssub.s32 %s14, 2
      %s27 = sadd.s32 1, %s22
      %p28 = scmp.ge.s32.totalorder %s27, 1
      %s29 = scalar_select %p28, 0, %s27
      %s30 = sadd.s32 1, %s21
      %s31 = scalar_select %p28, %s30, %s21
      %p32 = scmp.ge.s32.totalorder %s31, 2
      %s33 = scalar_select %p32, 0, %s31
      %s34 = ssub.s32 %s21, %s33
      %s35 = ssub.s32 %s22, %s29
      %s36 = sor.u32 %s34, %s35
      %p37 = scmp.eq.s32.totalorder %s36, 0
      %s39 = sadd.s32 %s38, 1
      %s40 = scalar_select %p37, %s38, %s39
      %p43 = pneg %p37
      %p44 = scmp.eq.s32.totalorder %s14, 1
      %p45 = por %p43, %p44
      %p46 = scmp.ne.s32.totalorder %s38, %s41
      %p47 = scmp.eq.s32.totalorder %s14, 0
      %p48 = por %p46, %p47
      %p49 = scmp.ne.s32.totalorder %s38, %s41
      %p50 = scmp.eq.s32.totalorder %s19, 1
      %p51 = por %p49, %p50
      %p52 = scmp.ne.s32.totalorder %s41, %s42
      %p53 = scmp.eq.s32.totalorder %s19, 0
      %p54 = por %p52, %p53
      %p55 = scmp.ne.s32.totalorder %s41, %s42
      %p56 = scmp.eq.s32.totalorder %s20, 1
      %p57 = por %p55, %p56
      %p59 = scmp.ne.s32.totalorder %s42, %s58
      %p60 = scmp.eq.s32.totalorder %s20, 0
      %p61 = por %p59, %p60
      %s63 = sadd.s32 %s62, 1
      %p66 = scmp.eq.s32.totalorder %s14, 1
      %p67 = scmp.ne.s32.totalorder %s62, %s64
      %p68 = scmp.eq.s32.totalorder %s14, 0
      %p69 = por %p67, %p68
      %p70 = scmp.ne.s32.totalorder %s62, %s64
      %p71 = scmp.eq.s32.totalorder %s19, 1
      %p72 = por %p70, %p71
      %p73 = scmp.ne.s32.totalorder %s64, %s65
      %p74 = scmp.eq.s32.totalorder %s19, 0
      %p75 = por %p73, %p74
      %p76 = scmp.ne.s32.totalorder %s64, %s65
      %p77 = scmp.eq.s32.totalorder %s20, 1
      %p78 = por %p76, %p77
      %p80 = scmp.ne.s32.totalorder %s65, %s79
      %p81 = scmp.eq.s32.totalorder %s20, 0
      %p82 = por %p80, %p81
      %s83 = ssub.s32 %s21, %s33
      %s84 = ssub.s32 %s22, %s29
      %s85 = sor.u32 %s83, %s84
      %p86 = scmp.eq.s32.totalorder %s85, 0
      %s88 = sadd.s32 %s87, 1
      %s89 = scalar_select %p86, %s87, %s88
      %p92 = pneg %p86
      %p93 = scmp.eq.s32.totalorder %s14, 1
      %p94 = por %p92, %p93
      %p95 = scmp.ne.s32.totalorder %s87, %s90
      %p96 = scmp.eq.s32.totalorder %s14, 0
      %p97 = por %p95, %p96
      %p98 = scmp.ne.s32.totalorder %s87, %s90
      %p99 = scmp.eq.s32.totalorder %s19, 1
      %p100 = por %p98, %p99
      %p101 = scmp.ne.s32.totalorder %s90, %s91
      %p102 = scmp.eq.s32.totalorder %s19, 0
      %p103 = por %p101, %p102
      %p104 = scmp.ne.s32.totalorder %s90, %s91
      %p105 = scmp.eq.s32.totalorder %s20, 1
      %p106 = por %p104, %p105
      %p108 = scmp.ne.s32.totalorder %s91, %s107
      %p109 = scmp.eq.s32.totalorder %s20, 0
      %p110 = por %p108, %p109
      %p111 = scmp.le.s32.totalorder 1, %s14
      %p112 = scmp.lt.s32.totalorder %s14, 3
      %p113 = pnand %p111, %p112
      %p114 = pneg %p113
      // Predicated region
      $region9: #{tpu_custom_call.1} parent=5 // pred_check
        _
      $region10: #{tpu_custom_call.1} parent=5 // pred_check_branch
        %116 = sbr.rel (%p113) target = $region12
      $region11: #{tpu_custom_call.1} parent=5 // pred_region
        %s117 = ssub.s32 %s14, 1
        // Predicated region
        $region13: #{tpu_custom_call.1} parent=11 // pred_check
          %p118 = pneg %p75
        $region14: #{tpu_custom_call.1} parent=11 // pred_check_branch
          %120 = sbr.rel (%p118) target = $region16
        $region15: #{tpu_custom_call.1} parent=11 // pred_region
          _
        $region16: #{tpu_custom_call.1} parent=11 // pred_fallthru
          _
      $region12: #{tpu_custom_call.1} parent=5 // pred_fallthru
        _
      %p121 = scmp.lt.s32.totalorder %s14, 2
      // Predicated region
      $region17: #{tpu_custom_call.1} parent=5 // pred_check
        %p122 = pneg %p121
      $region18: #{tpu_custom_call.1} parent=5 // pred_check_branch
        %124 = sbr.rel (%p122) target = $region20
      $region19: #{tpu_custom_call.1} parent=5 // pred_region
        // Predicated region
        $region21: #{tpu_custom_call.1} parent=19 // pred_check
          %p125 = pneg %p48
        $region22: #{tpu_custom_call.1} parent=19 // pred_check_branch
          %127 = sbr.rel (%p125) target = $region24
        $region23: #{tpu_custom_call.1} parent=19 // pred_region
          %s128 = sand.u32 %s38, 1
          %s129 = scalar_lea.sflag [#allocation3], %s128
          %s130 = sand.u32 %s38, 1
          %s131 = smul.addr %s130, 512
          %s132 = scalar_lea.vmem [#allocation2], %s131
          %s133 = smul.u32 2, %s22
          %s135 = ssub.s32 8192, 8192
          %136 = vsyncadd %s129, %s135
          %s137 = smul.addr %s21, 64
          %s138 = sadd.s32 %s133, %s137
          %s139 = smul.addr %s138, 128
          %s140 = scalar_lea.hbm %s0, %s139
          %s141 = sshll.u32 %s132, 4
          %s142 = int_to_ptr.vmem [resolvable:$true] %s141
          %147 = dma.hbm_to_vmem [thread:$0]  %s140, 8192, %s142, %s129, 256, 256, 16
        $region24: #{tpu_custom_call.1} parent=19 // pred_fallthru
          _
      $region20: #{tpu_custom_call.1} parent=5 // pred_fallthru
        _
      %p148 = scmp.le.s32.totalorder 1, %s14
      %p149 = scmp.lt.s32.totalorder %s14, 3
      %p150 = pnand %p148, %p149
      %p151 = pneg %p150
      // Predicated region
      $region25: #{tpu_custom_call.1} parent=5 // pred_check
        _
      $region26: #{tpu_custom_call.1} parent=5 // pred_check_branch
        %153 = sbr.rel (%p150) target = $region28
      $region27: #{tpu_custom_call.1} parent=5 // pred_region
        %s154 = ssub.s32 %s14, 1
        %s155 = sand.u32 %s41, 1
        %s156 = scalar_lea.sflag [#allocation3], %s155
        %s157 = sand.u32 %s41, 1
        %s158 = smul.addr %s157, 512
        %s159 = scalar_lea.vmem [#allocation2], %s158
        // Predicated region
        $region29: #{tpu_custom_call.1} parent=27 // pred_check
          %p160 = pneg %p54
        $region30: #{tpu_custom_call.1} parent=27 // pred_check_branch
          %162 = sbr.rel (%p160) target = $region32
        $region31: #{tpu_custom_call.1} parent=27 // pred_region
          %163 = dma.done %s156, 8192
        $region32: #{tpu_custom_call.1} parent=27 // pred_fallthru
          _
        %s164 = sand.u32 %s41, 1
        %s165 = scalar_lea.sflag [#allocation3], %s164
        %s166 = sand.u32 %s41, 1
        %s167 = smul.addr %s166, 512
        %s168 = scalar_lea.vmem [#allocation2], %s167
        %p169 = pneg %p54
        %p170 = pneg %p51
        %p171 = pneg %p75
        %p172 = pneg %p72
        %p173 = pneg %p103
        %p174 = pneg %p100
        %s175 = sand.u32 %s90, 1
        %s176 = scalar_lea.sflag [#allocation4], %s175
        %s177 = sand.u32 %s90, 1
        %s178 = smul.addr %s177, 512
        %s179 = scalar_lea.vmem [#allocation5], %s178
        %s180 = smul.u32 2, %s24
        %s181 = smul.u32 2, %s24
        %v182 = vld [vmem:[%s159] sm:$0xff]
        %v183 = vld [vmem:[%s159 + $0x8] sm:$0xff]
        %v184 = vld [vmem:[%s159 + $0x10] sm:$0xff]
        %v185 = vld [vmem:[%s159 + $0x18] sm:$0xff]
        %v186 = vld [vmem:[%s159 + $0x20] sm:$0xff]
        %v187 = vld [vmem:[%s159 + $0x28] sm:$0xff]
        %v188 = vld [vmem:[%s159 + $0x30] sm:$0xff]
        %v189 = vld [vmem:[%s159 + $0x38] sm:$0xff]
        %v190 = vld [vmem:[%s159 + $0x40] sm:$0xff]
        %v191 = vld [vmem:[%s159 + $0x48] sm:$0xff]
        %v192 = vld [vmem:[%s159 + $0x50] sm:$0xff]
        %v193 = vld [vmem:[%s159 + $0x58] sm:$0xff]
        %v194 = vld [vmem:[%s159 + $0x60] sm:$0xff]
        %v195 = vld [vmem:[%s159 + $0x68] sm:$0xff]
        %v196 = vld [vmem:[%s159 + $0x70] sm:$0xff]
        %v197 = vld [vmem:[%s159 + $0x78] sm:$0xff]
        %v198 = vld [vmem:[%s159 + $0x80] sm:$0xff]
        %v199 = vld [vmem:[%s159 + $0x88] sm:$0xff]
        %v200 = vld [vmem:[%s159 + $0x90] sm:$0xff]
        %v201 = vld [vmem:[%s159 + $0x98] sm:$0xff]
        %v202 = vld [vmem:[%s159 + $0xa0] sm:$0xff]
        %v203 = vld [vmem:[%s159 + $0xa8] sm:$0xff]
        %v204 = vld [vmem:[%s159 + $0xb0] sm:$0xff]
        %v205 = vld [vmem:[%s159 + $0xb8] sm:$0xff]
        %v206 = vld [vmem:[%s159 + $0xc0] sm:$0xff]
        %v207 = vld [vmem:[%s159 + $0xc8] sm:$0xff]
        %v208 = vld [vmem:[%s159 + $0xd0] sm:$0xff]
        %v209 = vld [vmem:[%s159 + $0xd8] sm:$0xff]
        %v210 = vld [vmem:[%s159 + $0xe0] sm:$0xff]
        %v211 = vld [vmem:[%s159 + $0xe8] sm:$0xff]
        %v212 = vld [vmem:[%s159 + $0xf0] sm:$0xff]
        %v213 = vld [vmem:[%s159 + $0xf8] sm:$0xff]
        %v214 = vld [vmem:[%s159 + $0x100] sm:$0xff]
        %v215 = vld [vmem:[%s159 + $0x108] sm:$0xff]
        %v216 = vld [vmem:[%s159 + $0x110] sm:$0xff]
        %v217 = vld [vmem:[%s159 + $0x118] sm:$0xff]
        %v218 = vld [vmem:[%s159 + $0x120] sm:$0xff]
        %v219 = vld [vmem:[%s159 + $0x128] sm:$0xff]
        %v220 = vld [vmem:[%s159 + $0x130] sm:$0xff]
        %v221 = vld [vmem:[%s159 + $0x138] sm:$0xff]
        %v222 = vld [vmem:[%s159 + $0x140] sm:$0xff]
        %v223 = vld [vmem:[%s159 + $0x148] sm:$0xff]
        %v224 = vld [vmem:[%s159 + $0x150] sm:$0xff]
        %v225 = vld [vmem:[%s159 + $0x158] sm:$0xff]
        %v226 = vld [vmem:[%s159 + $0x160] sm:$0xff]
        %v227 = vld [vmem:[%s159 + $0x168] sm:$0xff]
        %v228 = vld [vmem:[%s159 + $0x170] sm:$0xff]
        %v229 = vld [vmem:[%s159 + $0x178] sm:$0xff]
        %v230 = vld [vmem:[%s159 + $0x180] sm:$0xff]
        %v231 = vld [vmem:[%s159 + $0x188] sm:$0xff]
        %v232 = vld [vmem:[%s159 + $0x190] sm:$0xff]
        %v233 = vld [vmem:[%s159 + $0x198] sm:$0xff]
        %v234 = vld [vmem:[%s159 + $0x1a0] sm:$0xff]
        %v235 = vld [vmem:[%s159 + $0x1a8] sm:$0xff]
        %v236 = vld [vmem:[%s159 + $0x1b0] sm:$0xff]
        %v237 = vld [vmem:[%s159 + $0x1b8] sm:$0xff]
        %v238 = vld [vmem:[%s159 + $0x1c0] sm:$0xff]
        %v239 = vld [vmem:[%s159 + $0x1c8] sm:$0xff]
        %v240 = vld [vmem:[%s159 + $0x1d0] sm:$0xff]
        %v241 = vld [vmem:[%s159 + $0x1d8] sm:$0xff]
        %v242 = vld [vmem:[%s159 + $0x1e0] sm:$0xff]
        %v243 = vld [vmem:[%s159 + $0x1e8] sm:$0xff]
        %v244 = vld [vmem:[%s159 + $0x1f0] sm:$0xff]
        %v245 = vld [vmem:[%s159 + $0x1f8] sm:$0xff]
        %v246 = vld [vmem:[%s1] sm:$0xff]
        %v247 = vld [vmem:[%s1 + $0x8] sm:$0xff]
        %v248 = vld [vmem:[%s1 + $0x10] sm:$0xff]
        %v249 = vld [vmem:[%s1 + $0x18] sm:$0xff]
        %251 = vset.pattern.permute.xlu0 0
        %252 = vperm.xlu0 %251, %v246
        %v253 = vpop.permute.xlu0 %252
        %256 = vset.pattern.permute.xlu0 0
        %257 = vperm.xlu0 %256, %v247
        %v258 = vpop.permute.xlu0 %257
        %261 = vset.pattern.permute.xlu0 0
        %262 = vperm.xlu0 %261, %v248
        %v263 = vpop.permute.xlu0 %262
        %266 = vset.pattern.permute.xlu0 0
        %267 = vperm.xlu0 %266, %v249
        %v268 = vpop.permute.xlu0 %267
        %v270 = vmul.f32 %v182, %v253
        %v271 = vmul.f32 %v183, %v253
        %v272 = vmul.f32 %v184, %v258
        %v273 = vmul.f32 %v185, %v258
        %v274 = vmul.f32 %v186, %v263
        %v275 = vmul.f32 %v187, %v263
        %v276 = vmul.f32 %v188, %v268
        %v277 = vmul.f32 %v189, %v268
        %v278 = vmul.f32 %v190, %v253
        %v279 = vmul.f32 %v191, %v253
        %v280 = vmul.f32 %v192, %v258
        %v281 = vmul.f32 %v193, %v258
        %v282 = vmul.f32 %v194, %v263
        %v283 = vmul.f32 %v195, %v263
        %v284 = vmul.f32 %v196, %v268
        %v285 = vmul.f32 %v197, %v268
        %v286 = vmul.f32 %v198, %v253
        %v287 = vmul.f32 %v199, %v253
        %v288 = vmul.f32 %v200, %v258
        %v289 = vmul.f32 %v201, %v258
        %v290 = vmul.f32 %v202, %v263
        %v291 = vmul.f32 %v203, %v263
        %v292 = vmul.f32 %v204, %v268
        %v293 = vmul.f32 %v205, %v268
        %v294 = vmul.f32 %v206, %v253
        %v295 = vmul.f32 %v207, %v253
        %v296 = vmul.f32 %v208, %v258
        %v297 = vmul.f32 %v209, %v258
        %v298 = vmul.f32 %v210, %v263
        %v299 = vmul.f32 %v211, %v263
        %v300 = vmul.f32 %v212, %v268
        %v301 = vmul.f32 %v213, %v268
        %v302 = vmul.f32 %v214, %v253
        %v303 = vmul.f32 %v215, %v253
        %v304 = vmul.f32 %v216, %v258
        %v305 = vmul.f32 %v217, %v258
        %v306 = vmul.f32 %v218, %v263
        %v307 = vmul.f32 %v219, %v263
        %v308 = vmul.f32 %v220, %v268
        %v309 = vmul.f32 %v221, %v268
        %v310 = vmul.f32 %v222, %v253
        %v311 = vmul.f32 %v223, %v253
        %v312 = vmul.f32 %v224, %v258
        %v313 = vmul.f32 %v225, %v258
        %v314 = vmul.f32 %v226, %v263
        %v315 = vmul.f32 %v227, %v263
        %v316 = vmul.f32 %v228, %v268
        %v317 = vmul.f32 %v229, %v268
        %v318 = vmul.f32 %v230, %v253
        %v319 = vmul.f32 %v231, %v253
        %v320 = vmul.f32 %v232, %v258
        %v321 = vmul.f32 %v233, %v258
        %v322 = vmul.f32 %v234, %v263
        %v323 = vmul.f32 %v235, %v263
        %v324 = vmul.f32 %v236, %v268
        %v325 = vmul.f32 %v237, %v268
        %v326 = vmul.f32 %v238, %v253
        %v327 = vmul.f32 %v239, %v253
        %v328 = vmul.f32 %v240, %v258
        %v329 = vmul.f32 %v241, %v258
        %v330 = vmul.f32 %v242, %v263
        %v331 = vmul.f32 %v243, %v263
        %v332 = vmul.f32 %v244, %v268
        %v333 = vmul.f32 %v245, %v268
        %v334 = vadd.f32 %v270, %v272
        %v335 = vadd.f32 %v334, %v274
        %v336 = vadd.f32 %v335, %v276
        %v337 = vrot.slane %v336, 4
        %v338 = vadd.f32 %v336, %v337
        %v339 = vrot.slane %v338, 2
        %v340 = vadd.f32 %v338, %v339
        %v341 = vrot.slane %v340, 1
        %v342 = vadd.f32 %v340, %v341
        %v343 = vadd.f32 %v271, %v273
        %v344 = vadd.f32 %v343, %v275
        %v345 = vadd.f32 %v344, %v277
        %v346 = vrot.slane %v345, 4
        %v347 = vadd.f32 %v345, %v346
        %v348 = vrot.slane %v347, 2
        %v349 = vadd.f32 %v347, %v348
        %v350 = vrot.slane %v349, 1
        %v351 = vadd.f32 %v349, %v350
        %v352 = vadd.f32 %v278, %v280
        %v353 = vadd.f32 %v352, %v282
        %v354 = vadd.f32 %v353, %v284
        %v355 = vrot.slane %v354, 4
        %v356 = vadd.f32 %v354, %v355
        %v357 = vrot.slane %v356, 2
        %v358 = vadd.f32 %v356, %v357
        %v359 = vrot.slane %v358, 1
        %v360 = vadd.f32 %v358, %v359
        %v361 = vadd.f32 %v279, %v281
        %v362 = vadd.f32 %v361, %v283
        %v363 = vadd.f32 %v362, %v285
        %v364 = vrot.slane %v363, 4
        %v365 = vadd.f32 %v363, %v364
        %v366 = vrot.slane %v365, 2
        %v367 = vadd.f32 %v365, %v366
        %v368 = vrot.slane %v367, 1
        %v369 = vadd.f32 %v367, %v368
        %v370 = vadd.f32 %v286, %v288
        %v371 = vadd.f32 %v370, %v290
        %v372 = vadd.f32 %v371, %v292
        %v373 = vrot.slane %v372, 4
        %v374 = vadd.f32 %v372, %v373
        %v375 = vrot.slane %v374, 2
        %v376 = vadd.f32 %v374, %v375
        %v377 = vrot.slane %v376, 1
        %v378 = vadd.f32 %v376, %v377
        %v379 = vadd.f32 %v287, %v289
        %v380 = vadd.f32 %v379, %v291
        %v381 = vadd.f32 %v380, %v293
        %v382 = vrot.slane %v381, 4
        %v383 = vadd.f32 %v381, %v382
        %v384 = vrot.slane %v383, 2
        %v385 = vadd.f32 %v383, %v384
        %v386 = vrot.slane %v385, 1
        %v387 = vadd.f32 %v385, %v386
        %v388 = vadd.f32 %v294, %v296
        %v389 = vadd.f32 %v388, %v298
        %v390 = vadd.f32 %v389, %v300
        %v391 = vrot.slane %v390, 4
        %v392 = vadd.f32 %v390, %v391
        %v393 = vrot.slane %v392, 2
        %v394 = vadd.f32 %v392, %v393
        %v395 = vrot.slane %v394, 1
        %v396 = vadd.f32 %v394, %v395
        %v397 = vadd.f32 %v295, %v297
        %v398 = vadd.f32 %v397, %v299
        %v399 = vadd.f32 %v398, %v301
        %v400 = vrot.slane %v399, 4
        %v401 = vadd.f32 %v399, %v400
        %v402 = vrot.slane %v401, 2
        %v403 = vadd.f32 %v401, %v402
        %v404 = vrot.slane %v403, 1
        %v405 = vadd.f32 %v403, %v404
        %v406 = vadd.f32 %v302, %v304
        %v407 = vadd.f32 %v406, %v306
        %v408 = vadd.f32 %v407, %v308
        %v409 = vrot.slane %v408, 4
        %v410 = vadd.f32 %v408, %v409
        %v411 = vrot.slane %v410, 2
        %v412 = vadd.f32 %v410, %v411
        %v413 = vrot.slane %v412, 1
        %v414 = vadd.f32 %v412, %v413
        %v415 = vadd.f32 %v303, %v305
        %v416 = vadd.f32 %v415, %v307
        %v417 = vadd.f32 %v416, %v309
        %v418 = vrot.slane %v417, 4
        %v419 = vadd.f32 %v417, %v418
        %v420 = vrot.slane %v419, 2
        %v421 = vadd.f32 %v419, %v420
        %v422 = vrot.slane %v421, 1
        %v423 = vadd.f32 %v421, %v422
        %v424 = vadd.f32 %v310, %v312
        %v425 = vadd.f32 %v424, %v314
        %v426 = vadd.f32 %v425, %v316
        %v427 = vrot.slane %v426, 4
        %v428 = vadd.f32 %v426, %v427
        %v429 = vrot.slane %v428, 2
        %v430 = vadd.f32 %v428, %v429
        %v431 = vrot.slane %v430, 1
        %v432 = vadd.f32 %v430, %v431
        %v433 = vadd.f32 %v311, %v313
        %v434 = vadd.f32 %v433, %v315
        %v435 = vadd.f32 %v434, %v317
        %v436 = vrot.slane %v435, 4
        %v437 = vadd.f32 %v435, %v436
        %v438 = vrot.slane %v437, 2
        %v439 = vadd.f32 %v437, %v438
        %v440 = vrot.slane %v439, 1
        %v441 = vadd.f32 %v439, %v440
        %v442 = vadd.f32 %v318, %v320
        %v443 = vadd.f32 %v442, %v322
        %v444 = vadd.f32 %v443, %v324
        %v445 = vrot.slane %v444, 4
        %v446 = vadd.f32 %v444, %v445
        %v447 = vrot.slane %v446, 2
        %v448 = vadd.f32 %v446, %v447
        %v449 = vrot.slane %v448, 1
        %v450 = vadd.f32 %v448, %v449
        %v451 = vadd.f32 %v319, %v321
        %v452 = vadd.f32 %v451, %v323
        %v453 = vadd.f32 %v452, %v325
        %v454 = vrot.slane %v453, 4
        %v455 = vadd.f32 %v453, %v454
        %v456 = vrot.slane %v455, 2
        %v457 = vadd.f32 %v455, %v456
        %v458 = vrot.slane %v457, 1
        %v459 = vadd.f32 %v457, %v458
        %v460 = vadd.f32 %v326, %v328
        %v461 = vadd.f32 %v460, %v330
        %v462 = vadd.f32 %v461, %v332
        %v463 = vrot.slane %v462, 4
        %v464 = vadd.f32 %v462, %v463
        %v465 = vrot.slane %v464, 2
        %v466 = vadd.f32 %v464, %v465
        %v467 = vrot.slane %v466, 1
        %v468 = vadd.f32 %v466, %v467
        %v469 = vadd.f32 %v327, %v329
        %v470 = vadd.f32 %v469, %v331
        %v471 = vadd.f32 %v470, %v333
        %v472 = vrot.slane %v471, 4
        %v473 = vadd.f32 %v471, %v472
        %v474 = vrot.slane %v473, 2
        %v475 = vadd.f32 %v473, %v474
        %v476 = vrot.slane %v475, 1
        %v477 = vadd.f32 %v475, %v476
        %v478 = vmax.f32 %v342, %v378
        %v479 = vmax.f32 %v360, %v396
        %v480 = vmax.f32 %v478, %v414
        %v481 = vmax.f32 %v479, %v432
        %v482 = vmax.f32 %v480, %v450
        %v483 = vmax.f32 %v481, %v468
        %v484 = vmax.f32 %v482, %v483
        %v485 = vmax.f32 %v351, %v387
        %v486 = vmax.f32 %v369, %v405
        %v487 = vmax.f32 %v485, %v423
        %v488 = vmax.f32 %v486, %v441
        %v489 = vmax.f32 %v487, %v459
        %v490 = vmax.f32 %v488, %v477
        %v491 = vmax.f32 %v489, %v490
        %v492 = vsub.f32 %v342, %v484
        %v493 = vsub.f32 %v351, %v491
        %v494 = vsub.f32 %v360, %v484
        %v495 = vsub.f32 %v369, %v491
        %v496 = vsub.f32 %v378, %v484
        %v497 = vsub.f32 %v387, %v491
        %v498 = vsub.f32 %v396, %v484
        %v499 = vsub.f32 %v405, %v491
        %v500 = vsub.f32 %v414, %v484
        %v501 = vsub.f32 %v423, %v491
        %v502 = vsub.f32 %v432, %v484
        %v503 = vsub.f32 %v441, %v491
        %v504 = vsub.f32 %v450, %v484
        %v505 = vsub.f32 %v459, %v491
        %v506 = vsub.f32 %v468, %v484
        %v507 = vsub.f32 %v477, %v491
        %v508 = vmul.f32 %v492, 1.442695
        %v509 = vpow.pop %v508
        %v510 = vmul.f32 %v493, 1.442695
        %v511 = vpow.pop %v510
        %v512 = vmul.f32 %v494, 1.442695
        %v513 = vpow.pop %v512
        %v514 = vmul.f32 %v495, 1.442695
        %v515 = vpow.pop %v514
        %v516 = vmul.f32 %v496, 1.442695
        %v517 = vpow.pop %v516
        %v518 = vmul.f32 %v497, 1.442695
        %v519 = vpow.pop %v518
        %v520 = vmul.f32 %v498, 1.442695
        %v521 = vpow.pop %v520
        %v522 = vmul.f32 %v499, 1.442695
        %v523 = vpow.pop %v522
        %v524 = vmul.f32 %v500, 1.442695
        %v525 = vpow.pop %v524
        %v526 = vmul.f32 %v501, 1.442695
        %v527 = vpow.pop %v526
        %v528 = vmul.f32 %v502, 1.442695
        %v529 = vpow.pop %v528
        %v530 = vmul.f32 %v503, 1.442695
        %v531 = vpow.pop %v530
        %v532 = vmul.f32 %v504, 1.442695
        %v533 = vpow.pop %v532
        %v534 = vmul.f32 %v505, 1.442695
        %v535 = vpow.pop %v534
        %v536 = vmul.f32 %v506, 1.442695
        %v537 = vpow.pop %v536
        %v538 = vmul.f32 %v507, 1.442695
        %v539 = vpow.pop %v538
        %v556 = vrot.slane %v513, 7
        %vm557 = vcmask 1041409
        %v558 = vsel %vm557, %v556, %v509
        %v559 = vrot.slane %v517, 6
        %vm560 = vcmask 1042434
        %v561 = vsel %vm560, %v559, %v558
        %v562 = vrot.slane %v521, 5
        %vm563 = vcmask 1043459
        %v564 = vsel %vm563, %v562, %v561
        %v565 = vrot.slane %v525, 4
        %vm566 = vcmask 1044484
        %v567 = vsel %vm566, %v565, %v564
        %v568 = vrot.slane %v529, 3
        %vm569 = vcmask 1045509
        %v570 = vsel %vm569, %v568, %v567
        %v571 = vrot.slane %v533, 2
        %vm572 = vcmask 1046534
        %v573 = vsel %vm572, %v571, %v570
        %v574 = vrot.slane %v537, 1
        %vm575 = vcmask 1047559
        %v576 = vsel %vm575, %v574, %v573
        %v577 = vrot.slane %v515, 7
        %v578 = vsel %vm557, %v577, %v511
        %v579 = vrot.slane %v519, 6
        %v580 = vsel %vm560, %v579, %v578
        %v581 = vrot.slane %v523, 5
        %v582 = vsel %vm563, %v581, %v580
        %v583 = vrot.slane %v527, 4
        %v584 = vsel %vm566, %v583, %v582
        %v585 = vrot.slane %v531, 3
        %v586 = vsel %vm569, %v585, %v584
        %v587 = vrot.slane %v535, 2
        %v588 = vsel %vm572, %v587, %v586
        %v589 = vrot.slane %v539, 1
        %v590 = vsel %vm575, %v589, %v588
        %v593 = vrot.slane %v576, 4
        %v594 = vadd.f32 %v576, %v593
        %v595 = vrot.slane %v594, 2
        %v596 = vadd.f32 %v594, %v595
        %v597 = vrot.slane %v596, 1
        %v598 = vadd.f32 %v596, %v597
        %v599 = vrot.slane %v590, 4
        %v600 = vadd.f32 %v590, %v599
        %v601 = vrot.slane %v600, 2
        %v602 = vadd.f32 %v600, %v601
        %v603 = vrot.slane %v602, 1
        %v604 = vadd.f32 %v602, %v603
        %v605 = vlaneseq
        %v606 = vshrl.u32 %v605, 7
        %v607 = vsub.s32 0, %v606
        %v608 = vrot.slane %v598, %v607
        %v609 = vlaneseq
        %v610 = vshrl.u32 %v609, 7
        %v611 = vsub.s32 0, %v610
        %v612 = vrot.slane %v604, %v611
        %v613 = vrcp.pop %v608
        %v614 = vmul.f32 %v509, %v613
        %v615 = vrcp.pop %v612
        %v616 = vmul.f32 %v511, %v615
        %v617 = vmul.f32 %v513, %v613
        %v618 = vmul.f32 %v515, %v615
        %v619 = vmul.f32 %v517, %v613
        %v620 = vmul.f32 %v519, %v615
        %v621 = vmul.f32 %v521, %v613
        %v622 = vmul.f32 %v523, %v615
        %v623 = vmul.f32 %v525, %v613
        %v624 = vmul.f32 %v527, %v615
        %v625 = vmul.f32 %v529, %v613
        %v626 = vmul.f32 %v531, %v615
        %v627 = vmul.f32 %v533, %v613
        %v628 = vmul.f32 %v535, %v615
        %v629 = vmul.f32 %v537, %v613
        %v630 = vmul.f32 %v539, %v615
        %v631 = vlaneseq
        %v632 = vshrl.u32 %v631, 7
        %v633 = vsub.s32 0, %v632
        %v634 = vrot.slane %v614, %v633
        %v635 = vlaneseq
        %v636 = vshrl.u32 %v635, 7
        %v637 = vsub.s32 0, %v636
        %v638 = vrot.slane %v616, %v637
        %v639 = vlaneseq
        %v640 = vshrl.u32 %v639, 7
        %v641 = vsub.s32 0, %v640
        %v642 = vrot.slane %v617, %v641
        %v643 = vlaneseq
        %v644 = vshrl.u32 %v643, 7
        %v645 = vsub.s32 0, %v644
        %v646 = vrot.slane %v618, %v645
        %v647 = vlaneseq
        %v648 = vshrl.u32 %v647, 7
        %v649 = vsub.s32 0, %v648
        %v650 = vrot.slane %v619, %v649
        %v651 = vlaneseq
        %v652 = vshrl.u32 %v651, 7
        %v653 = vsub.s32 0, %v652
        %v654 = vrot.slane %v620, %v653
        %v655 = vlaneseq
        %v656 = vshrl.u32 %v655, 7
        %v657 = vsub.s32 0, %v656
        %v658 = vrot.slane %v621, %v657
        %v659 = vlaneseq
        %v660 = vshrl.u32 %v659, 7
        %v661 = vsub.s32 0, %v660
        %v662 = vrot.slane %v622, %v661
        %v663 = vlaneseq
        %v664 = vshrl.u32 %v663, 7
        %v665 = vsub.s32 0, %v664
        %v666 = vrot.slane %v623, %v665
        %v667 = vlaneseq
        %v668 = vshrl.u32 %v667, 7
        %v669 = vsub.s32 0, %v668
        %v670 = vrot.slane %v624, %v669
        %v671 = vlaneseq
        %v672 = vshrl.u32 %v671, 7
        %v673 = vsub.s32 0, %v672
        %v674 = vrot.slane %v625, %v673
        %v675 = vlaneseq
        %v676 = vshrl.u32 %v675, 7
        %v677 = vsub.s32 0, %v676
        %v678 = vrot.slane %v626, %v677
        %v679 = vlaneseq
        %v680 = vshrl.u32 %v679, 7
        %v681 = vsub.s32 0, %v680
        %v682 = vrot.slane %v627, %v681
        %v683 = vlaneseq
        %v684 = vshrl.u32 %v683, 7
        %v685 = vsub.s32 0, %v684
        %v686 = vrot.slane %v628, %v685
        %v687 = vlaneseq
        %v688 = vshrl.u32 %v687, 7
        %v689 = vsub.s32 0, %v688
        %v690 = vrot.slane %v629, %v689
        %v691 = vlaneseq
        %v692 = vshrl.u32 %v691, 7
        %v693 = vsub.s32 0, %v692
        %v694 = vrot.slane %v630, %v693
        %v695 = vmul.f32 %v182, %v634
        %v696 = vmul.f32 %v183, %v638
        %v697 = vmul.f32 %v184, %v634
        %v698 = vmul.f32 %v185, %v638
        %v699 = vmul.f32 %v186, %v634
        %v700 = vmul.f32 %v187, %v638
        %v701 = vmul.f32 %v188, %v634
        %v702 = vmul.f32 %v189, %v638
        %v703 = vmul.f32 %v190, %v642
        %v704 = vmul.f32 %v191, %v646
        %v705 = vmul.f32 %v192, %v642
        %v706 = vmul.f32 %v193, %v646
        %v707 = vmul.f32 %v194, %v642
        %v708 = vmul.f32 %v195, %v646
        %v709 = vmul.f32 %v196, %v642
        %v710 = vmul.f32 %v197, %v646
        %v711 = vmul.f32 %v198, %v650
        %v712 = vmul.f32 %v199, %v654
        %v713 = vmul.f32 %v200, %v650
        %v714 = vmul.f32 %v201, %v654
        %v715 = vmul.f32 %v202, %v650
        %v716 = vmul.f32 %v203, %v654
        %v717 = vmul.f32 %v204, %v650
        %v718 = vmul.f32 %v205, %v654
        %v719 = vmul.f32 %v206, %v658
        %v720 = vmul.f32 %v207, %v662
        %v721 = vmul.f32 %v208, %v658
        %v722 = vmul.f32 %v209, %v662
        %v723 = vmul.f32 %v210, %v658
        %v724 = vmul.f32 %v211, %v662
        %v725 = vmul.f32 %v212, %v658
        %v726 = vmul.f32 %v213, %v662
        %v727 = vmul.f32 %v214, %v666
        %v728 = vmul.f32 %v215, %v670
        %v729 = vmul.f32 %v216, %v666
        %v730 = vmul.f32 %v217, %v670
        %v731 = vmul.f32 %v218, %v666
        %v732 = vmul.f32 %v219, %v670
        %v733 = vmul.f32 %v220, %v666
        %v734 = vmul.f32 %v221, %v670
        %v735 = vmul.f32 %v222, %v674
        %v736 = vmul.f32 %v223, %v678
        %v737 = vmul.f32 %v224, %v674
        %v738 = vmul.f32 %v225, %v678
        %v739 = vmul.f32 %v226, %v674
        %v740 = vmul.f32 %v227, %v678
        %v741 = vmul.f32 %v228, %v674
        %v742 = vmul.f32 %v229, %v678
        %v743 = vmul.f32 %v230, %v682
        %v744 = vmul.f32 %v231, %v686
        %v745 = vmul.f32 %v232, %v682
        %v746 = vmul.f32 %v233, %v686
        %v747 = vmul.f32 %v234, %v682
        %v748 = vmul.f32 %v235, %v686
        %v749 = vmul.f32 %v236, %v682
        %v750 = vmul.f32 %v237, %v686
        %v751 = vmul.f32 %v238, %v690
        %v752 = vmul.f32 %v239, %v694
        %v753 = vmul.f32 %v240, %v690
        %v754 = vmul.f32 %v241, %v694
        %v755 = vmul.f32 %v242, %v690
        %v756 = vmul.f32 %v243, %v694
        %v757 = vmul.f32 %v244, %v690
        %v758 = vmul.f32 %v245, %v694
        %759 = vst [vmem:[%s179] sm:$0xff] %v695
        %760 = vst [vmem:[%s179 + $0x8] sm:$0xff] %v696
        %761 = vst [vmem:[%s179 + $0x10] sm:$0xff] %v697
        %762 = vst [vmem:[%s179 + $0x18] sm:$0xff] %v698
        %763 = vst [vmem:[%s179 + $0x20] sm:$0xff] %v699
        %764 = vst [vmem:[%s179 + $0x28] sm:$0xff] %v700
        %765 = vst [vmem:[%s179 + $0x30] sm:$0xff] %v701
        %766 = vst [vmem:[%s179 + $0x38] sm:$0xff] %v702
        %767 = vst [vmem:[%s179 + $0x40] sm:$0xff] %v703
        %768 = vst [vmem:[%s179 + $0x48] sm:$0xff] %v704
        %769 = vst [vmem:[%s179 + $0x50] sm:$0xff] %v705
        %770 = vst [vmem:[%s179 + $0x58] sm:$0xff] %v706
        %771 = vst [vmem:[%s179 + $0x60] sm:$0xff] %v707
        %772 = vst [vmem:[%s179 + $0x68] sm:$0xff] %v708
        %773 = vst [vmem:[%s179 + $0x70] sm:$0xff] %v709
        %774 = vst [vmem:[%s179 + $0x78] sm:$0xff] %v710
        %775 = vst [vmem:[%s179 + $0x80] sm:$0xff] %v711
        %776 = vst [vmem:[%s179 + $0x88] sm:$0xff] %v712
        %777 = vst [vmem:[%s179 + $0x90] sm:$0xff] %v713
        %778 = vst [vmem:[%s179 + $0x98] sm:$0xff] %v714
        %779 = vst [vmem:[%s179 + $0xa0] sm:$0xff] %v715
        %780 = vst [vmem:[%s179 + $0xa8] sm:$0xff] %v716
        %781 = vst [vmem:[%s179 + $0xb0] sm:$0xff] %v717
        %782 = vst [vmem:[%s179 + $0xb8] sm:$0xff] %v718
        %783 = vst [vmem:[%s179 + $0xc0] sm:$0xff] %v719
        %784 = vst [vmem:[%s179 + $0xc8] sm:$0xff] %v720
        %785 = vst [vmem:[%s179 + $0xd0] sm:$0xff] %v721
        %786 = vst [vmem:[%s179 + $0xd8] sm:$0xff] %v722
        %787 = vst [vmem:[%s179 + $0xe0] sm:$0xff] %v723
        %788 = vst [vmem:[%s179 + $0xe8] sm:$0xff] %v724
        %789 = vst [vmem:[%s179 + $0xf0] sm:$0xff] %v725
        %790 = vst [vmem:[%s179 + $0xf8] sm:$0xff] %v726
        %791 = vst [vmem:[%s179 + $0x100] sm:$0xff] %v727
        %792 = vst [vmem:[%s179 + $0x108] sm:$0xff] %v728
        %793 = vst [vmem:[%s179 + $0x110] sm:$0xff] %v729
        %794 = vst [vmem:[%s179 + $0x118] sm:$0xff] %v730
        %795 = vst [vmem:[%s179 + $0x120] sm:$0xff] %v731
        %796 = vst [vmem:[%s179 + $0x128] sm:$0xff] %v732
        %797 = vst [vmem:[%s179 + $0x130] sm:$0xff] %v733
        %798 = vst [vmem:[%s179 + $0x138] sm:$0xff] %v734
        %799 = vst [vmem:[%s179 + $0x140] sm:$0xff] %v735
        %800 = vst [vmem:[%s179 + $0x148] sm:$0xff] %v736
        %801 = vst [vmem:[%s179 + $0x150] sm:$0xff] %v737
        %802 = vst [vmem:[%s179 + $0x158] sm:$0xff] %v738
        %803 = vst [vmem:[%s179 + $0x160] sm:$0xff] %v739
        %804 = vst [vmem:[%s179 + $0x168] sm:$0xff] %v740
        %805 = vst [vmem:[%s179 + $0x170] sm:$0xff] %v741
        %806 = vst [vmem:[%s179 + $0x178] sm:$0xff] %v742
        %807 = vst [vmem:[%s179 + $0x180] sm:$0xff] %v743
        %808 = vst [vmem:[%s179 + $0x188] sm:$0xff] %v744
        %809 = vst [vmem:[%s179 + $0x190] sm:$0xff] %v745
        %810 = vst [vmem:[%s179 + $0x198] sm:$0xff] %v746
        %811 = vst [vmem:[%s179 + $0x1a0] sm:$0xff] %v747
        %812 = vst [vmem:[%s179 + $0x1a8] sm:$0xff] %v748
        %813 = vst [vmem:[%s179 + $0x1b0] sm:$0xff] %v749
        %814 = vst [vmem:[%s179 + $0x1b8] sm:$0xff] %v750
        %815 = vst [vmem:[%s179 + $0x1c0] sm:$0xff] %v751
        %816 = vst [vmem:[%s179 + $0x1c8] sm:$0xff] %v752
        %817 = vst [vmem:[%s179 + $0x1d0] sm:$0xff] %v753
        %818 = vst [vmem:[%s179 + $0x1d8] sm:$0xff] %v754
        %819 = vst [vmem:[%s179 + $0x1e0] sm:$0xff] %v755
        %820 = vst [vmem:[%s179 + $0x1e8] sm:$0xff] %v756
        %821 = vst [vmem:[%s179 + $0x1f0] sm:$0xff] %v757
        %822 = vst [vmem:[%s179 + $0x1f8] sm:$0xff] %v758
        %s823 = sand.u32 %s90, 1
        %s824 = scalar_lea.sflag [#allocation4], %s823
        %s825 = sand.u32 %s90, 1
        %s826 = smul.addr %s825, 512
        %s827 = scalar_lea.vmem [#allocation5], %s826
        // Predicated region
        $region33: #{tpu_custom_call.1} parent=27 // pred_check
          %p828 = pneg %p100
        $region34: #{tpu_custom_call.1} parent=27 // pred_check_branch
          %830 = sbr.rel (%p828) target = $region36
        $region35: #{tpu_custom_call.1} parent=27 // pred_region
          %s831 = smul.u32 2, %s24
          %s833 = ssub.s32 8192, 8192
          %834 = vsyncadd %s824, %s833
          %s835 = smul.addr %s23, 64
          %s836 = sadd.s32 %s831, %s835
          %s837 = smul.addr %s836, 128
          %s838 = scalar_lea.hbm %s2, %s837
          %s839 = sshll.u32 %s827, 4
          %s840 = int_to_ptr.vmem [resolvable:$true] %s839
          %845 = dma.vmem_to_hbm [thread:$0]  %s840, 8192, %s838, %s824, 256, 256, 16
        $region36: #{tpu_custom_call.1} parent=27 // pred_fallthru
          _
      $region28: #{tpu_custom_call.1} parent=5 // pred_fallthru
        _
      %p846 = scmp.le.s32.totalorder 2, %s14
      // Predicated region
      $region37: #{tpu_custom_call.1} parent=5 // pred_check
        %p847 = pneg %p846
      $region38: #{tpu_custom_call.1} parent=5 // pred_check_branch
        %849 = sbr.rel (%p847) target = $region40
      $region39: #{tpu_custom_call.1} parent=5 // pred_region
        %s850 = ssub.s32 %s14, 2
        // Predicated region
        $region41: #{tpu_custom_call.1} parent=39 // pred_check
          %p851 = pneg %p106
        $region42: #{tpu_custom_call.1} parent=39 // pred_check_branch
          %853 = sbr.rel (%p851) target = $region44
        $region43: #{tpu_custom_call.1} parent=39 // pred_region
          %s854 = sand.u32 %s91, 1
          %s855 = scalar_lea.sflag [#allocation4], %s854
          %s856 = sand.u32 %s91, 1
          %s857 = smul.addr %s856, 512
          %s858 = scalar_lea.vmem [#allocation5], %s857
          %859 = dma.done %s855, 8192
        $region44: #{tpu_custom_call.1} parent=39 // pred_fallthru
          _
      $region40: #{tpu_custom_call.1} parent=5 // pred_fallthru
        _
    $region6: #{tpu_custom_call.1} parent=1 // loop_footer
      %s18 = sadd.s32 1, %s14
    $region7: #{tpu_custom_call.1} parent=1 // loop_footer_branch
      %13 = sbr.rel target = $region3
    $region8: #{tpu_custom_call.1} parent=1 // loop_exit
      _
    %860 = vsyncpa [#allocation3], 1
    %s861 = scalar_lea.sflag [#allocation3], 1
    %862 = vsyncpa %s861, 1
    %863 = vsyncpa [#allocation4], 1
    %s864 = scalar_lea.sflag [#allocation4], 1
    %865 = vsyncpa %s864, 1

</llo_original>
